<compile_context>
chip_gen: v6e
topology: v6e:2x2x1
jax: 0.10.0
libtpu: 0.0.40
codegen_flags: <defaults>
</compile_context>

<pallas_src>
import functools

import jax
import jax.numpy as jnp
from jax.experimental import pallas as pl
from jax.experimental.pallas import tpu as pltpu

IN_FEATURES = 28 * 28   # 784, fixed by the module
K_PAD = 896             # 7 * 128  (K aligned to MXU / lanes)
H_PAD = 128             # hidden padded to one full lane tile
OUT_PAD = 128           # output padded to one full lane tile
N_OUT = 10


def _round_up(x, m):
    return (x + m - 1) // m * m


def mlp_kernel(x_ref, w1_ref, b1_ref, w2_ref, b2_ref, o_ref):
    # x: (TB, 896) bf16, w1: (896, 128) bf16, b1: (1, 128) f32,
    # w2: (128, 128) bf16, b2: (1, 128) f32, o: (TB, 128) f32
    h = jnp.dot(x_ref[...], w1_ref[...], preferred_element_type=jnp.float32)
    h = jnp.maximum(h + b1_ref[...], 0.0)           # bias + ReLU in f32
    # TODO(synk): nn.Dropout is identity in eval mode; training-mode dropout
    # would use pltpu.prng_seed / pltpu.prng_random_bits here.
    o = jnp.dot(h.astype(jnp.bfloat16), w2_ref[...],
                preferred_element_type=jnp.float32)
    o_ref[...] = jnp.maximum(o + b2_ref[...], 0.0)  # final ReLU


@functools.partial(jax.jit, static_argnames=())
def mlp_forward(x_nchw, w1, b1, w2, b2):
    """x_nchw: (B, 1, 28, 28) f32; w1: (784, H); b1: (H,); w2: (H, 10); b2: (10,)."""
    B = x_nchw.shape[0]
    H = w1.shape[1]
    assert w1.shape[0] == IN_FEATURES and w2.shape == (H, N_OUT)

    # nn.Flatten(): (B, C, H, W) -> (B, C*H*W), row-major (same as torch).
    x_flat = x_nchw.reshape(B, -1)

    # Batch tile: multiple of 128 (MXU M / sublane friendly); large enough to
    # amortize per-grid-step overhead (~0.35 us), small enough that the bf16
    # x tile (1.75 MiB/buffer at TB=1024) double-buffers comfortably in VMEM.
    TB = min(1024, max(128, _round_up(B, 128)))
    Bp = _round_up(B, TB)

    # Zero-padded, lane-dense, bf16 MXU operands (f32 biases).
    x_p = jnp.pad(x_flat.astype(jnp.bfloat16),
                  ((0, Bp - B), (0, K_PAD - IN_FEATURES)))
    w1_p = jnp.pad(w1.astype(jnp.bfloat16),
                   ((0, K_PAD - IN_FEATURES), (0, H_PAD - H)))
    b1_p = jnp.pad(b1.astype(jnp.float32), (0, H_PAD - H)).reshape(1, H_PAD)
    w2_p = jnp.pad(w2.astype(jnp.bfloat16),
                   ((0, H_PAD - H), (0, OUT_PAD - N_OUT)))
    b2_p = jnp.pad(b2.astype(jnp.float32), (0, OUT_PAD - N_OUT)).reshape(1, OUT_PAD)

    grid = (Bp // TB,)
    bytes_accessed = (Bp * K_PAD * 2            # x (bf16)
                      + K_PAD * H_PAD * 2       # w1
                      + H_PAD * OUT_PAD * 2     # w2
                      + (H_PAD + OUT_PAD) * 4   # biases
                      + Bp * OUT_PAD * 4)       # out (f32)
    cost = pl.CostEstimate(
        flops=2 * Bp * (K_PAD * H_PAD + H_PAD * OUT_PAD),
        transcendentals=0,
        bytes_accessed=bytes_accessed,
    )

    out = pl.pallas_call(
        mlp_kernel,
        out_shape=jax.ShapeDtypeStruct((Bp, OUT_PAD), jnp.float32),
        grid_spec=pltpu.PrefetchScalarGridSpec(
            num_scalar_prefetch=0,
            grid=grid,
            in_specs=[
                pl.BlockSpec((TB, K_PAD), lambda i: (i, 0)),      # x tile (pipelined)
                pl.BlockSpec((K_PAD, H_PAD), lambda i: (0, 0)),   # w1 resident
                pl.BlockSpec((1, H_PAD), lambda i: (0, 0)),       # b1 resident
                pl.BlockSpec((H_PAD, OUT_PAD), lambda i: (0, 0)), # w2 resident
                pl.BlockSpec((1, OUT_PAD), lambda i: (0, 0)),     # b2 resident
            ],
            out_specs=pl.BlockSpec((TB, OUT_PAD), lambda i: (i, 0)),
        ),
        compiler_params=pltpu.CompilerParams(
            dimension_semantics=("parallel",),
            vmem_limit_bytes=32 * 1024 * 1024,
        ),
        cost_estimate=cost,
    )(x_p, w1_p, b1_p, w2_p, b2_p)

    # Drop batch / lane padding.
    return out[:B, :N_OUT]


if __name__ == "__main__":
    B = 2
    N_HIDDEN_1 = 32

    key = jax.random.PRNGKey(0)
    kx, kw1, kb1, kw2, kb2 = jax.random.split(key, 5)

    # MNIST-like NCHW input
    x = jax.random.normal(kx, (B, 1, 28, 28), dtype=jnp.float32)

    # Deterministic parameter init (PyTorch Linear stores (out, in); we keep (in, out))
    lim1 = 1.0 / jnp.sqrt(IN_FEATURES)
    w1 = jax.random.uniform(kw1, (IN_FEATURES, N_HIDDEN_1), jnp.float32, -lim1, lim1)
    b1 = jax.random.uniform(kb1, (N_HIDDEN_1,), jnp.float32, -lim1, lim1)
    lim2 = 1.0 / jnp.sqrt(N_HIDDEN_1)
    w2 = jax.random.uniform(kw2, (N_HIDDEN_1, N_OUT), jnp.float32, -lim2, lim2)
    b2 = jax.random.uniform(kb2, (N_OUT,), jnp.float32, -lim2, lim2)

    out = mlp_forward(x, w1, b1, w2, b2)
    out = jax.block_until_ready(out)

    # Reference in plain JAX f32 (eval-mode dropout = identity). Tolerance is
    # loosened because the kernel feeds bf16 inputs to the MXU (f32 accumulate).
    x_flat = x.reshape(B, -1)
    ref = jnp.maximum(jnp.maximum(x_flat @ w1 + b1, 0.0) @ w2 + b2, 0.0)
    assert out.shape == (B, N_OUT)
    assert jnp.allclose(out, ref, atol=5e-2, rtol=5e-2), (
        f"max abs err {jnp.max(jnp.abs(out - ref))}")

    print("KERNEL_OK")
</pallas_src>

<mosaic_0001>
module attributes {stable_mosaic.version = 11 : i64} {
  func.func @mlp_kernel(%arg0: i32, %arg1: memref<128x896xbf16, #tpu.memory_space<vmem>>, %arg2: memref<896x128xbf16, #tpu.memory_space<vmem>>, %arg3: memref<1x128xf32, #tpu.memory_space<vmem>>, %arg4: memref<128x128xbf16, #tpu.memory_space<vmem>>, %arg5: memref<1x128xf32, #tpu.memory_space<vmem>>, %arg6: memref<128x128xf32, #tpu.memory_space<vmem>>) attributes {dimension_semantics = [#tpu.dimension_semantics<parallel>], iteration_bounds = array<i64: 1>, scalar_prefetch = 0 : i64, scratch_operands = 0 : i64, tpu.core_type = #tpu.core_type<tc>, window_params = [{transform_indices = @transform_0, window_bounds = array<i64: 128, 896>}, {pipeline_mode = #tpu.pipeline_mode<synchronous>, transform_indices = @transform_1, window_bounds = array<i64: 896, 128>}, {pipeline_mode = #tpu.pipeline_mode<synchronous>, transform_indices = @transform_2, window_bounds = array<i64: 1, 128>}, {pipeline_mode = #tpu.pipeline_mode<synchronous>, transform_indices = @transform_3, window_bounds = array<i64: 128, 128>}, {pipeline_mode = #tpu.pipeline_mode<synchronous>, transform_indices = @transform_4, window_bounds = array<i64: 1, 128>}, {transform_indices = @transform_5, window_bounds = array<i64: 128, 128>}]} {
    %c0 = arith.constant 0 : index
    %c0_0 = arith.constant 0 : index
    %0 = vector.load %arg1[%c0, %c0_0] : memref<128x896xbf16, #tpu.memory_space<vmem>>, vector<128x896xbf16>
    %c0_1 = arith.constant 0 : index
    %c0_2 = arith.constant 0 : index
    %1 = vector.load %arg2[%c0_1, %c0_2] : memref<896x128xbf16, #tpu.memory_space<vmem>>, vector<896x128xbf16>
    %cst = arith.constant dense<0.000000e+00> : vector<128x128xf32>
    %2 = tpu.matmul %0, %1, %cst {dimension_numbers = #tpu.dot_dimension_numbers<[1], [0], [0], [1], [0, 0, 1, 1], [], []>} : vector<128x896xbf16>, vector<896x128xbf16>, vector<128x128xf32> -> vector<128x128xf32>
    %c0_3 = arith.constant 0 : index
    %c0_4 = arith.constant 0 : index
    %3 = vector.load %arg3[%c0_3, %c0_4] : memref<1x128xf32, #tpu.memory_space<vmem>>, vector<1x128xf32>
    %4 = vector.broadcast %3 : vector<1x128xf32> to vector<128x128xf32>
    %5 = arith.addf %2, %4 : vector<128x128xf32>
    %cst_5 = arith.constant 0.000000e+00 : f32
    %6 = vector.broadcast %cst_5 : f32 to vector<128x128xf32>
    %7 = arith.maximumf %5, %6 : vector<128x128xf32>
    %8 = arith.truncf %7 : vector<128x128xf32> to vector<128x128xbf16>
    %c0_6 = arith.constant 0 : index
    %c0_7 = arith.constant 0 : index
    %9 = vector.load %arg4[%c0_6, %c0_7] : memref<128x128xbf16, #tpu.memory_space<vmem>>, vector<128x128xbf16>
    %cst_8 = arith.constant dense<0.000000e+00> : vector<128x128xf32>
    %10 = tpu.matmul %8, %9, %cst_8 {dimension_numbers = #tpu.dot_dimension_numbers<[1], [0], [0], [1], [0, 0, 1, 1], [], []>} : vector<128x128xbf16>, vector<128x128xbf16>, vector<128x128xf32> -> vector<128x128xf32>
    %c0_9 = arith.constant 0 : index
    %c0_10 = arith.constant 0 : index
    %11 = vector.load %arg5[%c0_9, %c0_10] : memref<1x128xf32, #tpu.memory_space<vmem>>, vector<1x128xf32>
    %12 = vector.broadcast %11 : vector<1x128xf32> to vector<128x128xf32>
    %13 = arith.addf %10, %12 : vector<128x128xf32>
    %cst_11 = arith.constant 0.000000e+00 : f32
    %14 = vector.broadcast %cst_11 : f32 to vector<128x128xf32>
    %15 = arith.maximumf %13, %14 : vector<128x128xf32>
    %c0_12 = arith.constant 0 : index
    %c0_13 = arith.constant 0 : index
    %16 = vector.load %arg6[%c0_12, %c0_13] : memref<128x128xf32, #tpu.memory_space<vmem>>, vector<128x128xf32>
    tpu.vector_store %arg6[%c0_12, %c0_13], %15 {strides = array<i32>} : memref<128x128xf32, #tpu.memory_space<vmem>>, vector<128x128xf32>,
    return
  }
  func.func @transform_0(%arg0: i32) -> (i32, i32) {
    %c0_i32 = arith.constant 0 : i32
    %c0_i32_0 = arith.constant 0 : i32
    return %arg0, %c0_i32 : i32, i32
  }
  func.func @transform_1(%arg0: i32) -> (i32, i32) {
    %c0_i32 = arith.constant 0 : i32
    %c0_i32_0 = arith.constant 0 : i32
    %c0_i32_1 = arith.constant 0 : i32
    return %c0_i32, %c0_i32_0 : i32, i32
  }
  func.func @transform_2(%arg0: i32) -> (i32, i32) {
    %c0_i32 = arith.constant 0 : i32
    %c0_i32_0 = arith.constant 0 : i32
    %c0_i32_1 = arith.constant 0 : i32
    return %c0_i32, %c0_i32_0 : i32, i32
  }
  func.func @transform_3(%arg0: i32) -> (i32, i32) {
    %c0_i32 = arith.constant 0 : i32
    %c0_i32_0 = arith.constant 0 : i32
    %c0_i32_1 = arith.constant 0 : i32
    return %c0_i32, %c0_i32_0 : i32, i32
  }
  func.func @transform_4(%arg0: i32) -> (i32, i32) {
    %c0_i32 = arith.constant 0 : i32
    %c0_i32_0 = arith.constant 0 : i32
    %c0_i32_1 = arith.constant 0 : i32
    return %c0_i32, %c0_i32_0 : i32, i32
  }
  func.func @transform_5(%arg0: i32) -> (i32, i32) {
    %c0_i32 = arith.constant 0 : i32
    %c0_i32_0 = arith.constant 0 : i32
    return %arg0, %c0_i32 : i32, i32
  }
}

</mosaic_0001>

<llo_original>
// kernel: mlp_forward.1
$region0: #{mlp_forward.1}
  #allocation0 [shape = 'u32[]', space=smem, size = 0x4, offset = 0x4, fixed_abs, tag = 'smem constant byte address 0x4 - core index']
  #allocation1 [shape = 'u32[144,128]{1,0:T(1,128)}', space=vmem, size = 0x12000, scoped, tag = 'internal scratch']
  %s0 = inlined_call_operand.vmem [shape: bf16[128,896], index: 0, kind: input, shape index: {}]
  %s1 = inlined_call_operand.vmem [shape: bf16[896,128], index: 1, kind: input, shape index: {}]
  %s2 = inlined_call_operand.vmem [shape: f32[1,128], index: 2, kind: input, shape index: {}]
  %s3 = inlined_call_operand.vmem [shape: bf16[128,128], index: 3, kind: input, shape index: {}]
  %s4 = inlined_call_operand.vmem [shape: f32[1,128], index: 4, kind: input, shape index: {}]
  %s5 = inlined_call_operand.vmem [shape: f32[128,128], index: 5, kind: output, shape index: {}]
  %s6 = sld [smem:[#allocation0]]
  $region30: #{mlp_forward.1} parent=0
    _
  %s8 = ssub.s32 1, %s6
  %s9 = scalar_select 0, %s8, %s6
  // Predicated region
  $region2: #{mlp_forward.1} parent=0 // pred_check
    _
  $region3: #{mlp_forward.1} parent=0 // pred_check_branch
    %11 = sbr.rel (0) target = $region5
  $region4: #{mlp_forward.1} parent=0 // pred_region
    _
  $region5: #{mlp_forward.1} parent=0 // pred_fallthru
    _
  // Predicated region
  $region6: #{mlp_forward.1} parent=0 // pred_check
    _
  $region7: #{mlp_forward.1} parent=0 // pred_check_branch
    %13 = sbr.rel (0) target = $region9
  $region8: #{mlp_forward.1} parent=0 // pred_region
    _
  $region9: #{mlp_forward.1} parent=0 // pred_fallthru
    _
  // Predicated region
  $region10: #{mlp_forward.1} parent=0 // pred_check
    _
  $region11: #{mlp_forward.1} parent=0 // pred_check_branch
    %15 = sbr.rel (0) target = $region13
  $region12: #{mlp_forward.1} parent=0 // pred_region
    _
  $region13: #{mlp_forward.1} parent=0 // pred_fallthru
    _
  // Predicated region
  $region14: #{mlp_forward.1} parent=0 // pred_check
    _
  $region15: #{mlp_forward.1} parent=0 // pred_check_branch
    %17 = sbr.rel (0) target = $region17
  $region16: #{mlp_forward.1} parent=0 // pred_region
    _
  $region17: #{mlp_forward.1} parent=0 // pred_fallthru
    _
  // Predicated region
  $region18: #{mlp_forward.1} parent=0 // pred_check
    _
  $region19: #{mlp_forward.1} parent=0 // pred_check_branch
    %19 = sbr.rel (0) target = $region21
  $region20: #{mlp_forward.1} parent=0 // pred_region
    _
  $region21: #{mlp_forward.1} parent=0 // pred_fallthru
    _
  %v21 = vld [vmem:[%s0] sm:$0xff]
  %v22 = vld [vmem:[%s0 + $0x8] sm:$0xff]
  %v23 = vld [vmem:[%s0 + $0x10] sm:$0xff]
  %v24 = vld [vmem:[%s0 + $0x18] sm:$0xf]
  %v25 = vld [vmem:[%s0 + $0x1c] sm:$0xff]
  %v26 = vld [vmem:[%s0 + $0x24] sm:$0xff]
  %v27 = vld [vmem:[%s0 + $0x2c] sm:$0xff]
  %v28 = vld [vmem:[%s0 + $0x34] sm:$0xf]
  %v29 = vld [vmem:[%s0 + $0x38] sm:$0xff]
  %v30 = vld [vmem:[%s0 + $0x40] sm:$0xff]
  %v31 = vld [vmem:[%s0 + $0x48] sm:$0xff]
  %v32 = vld [vmem:[%s0 + $0x50] sm:$0xf]
  %v33 = vld [vmem:[%s0 + $0x54] sm:$0xff]
  %v34 = vld [vmem:[%s0 + $0x5c] sm:$0xff]
  %v35 = vld [vmem:[%s0 + $0x64] sm:$0xff]
  %v36 = vld [vmem:[%s0 + $0x6c] sm:$0xf]
  %v37 = vld [vmem:[%s0 + $0x70] sm:$0xff]
  %v38 = vld [vmem:[%s0 + $0x78] sm:$0xff]
  %v39 = vld [vmem:[%s0 + $0x80] sm:$0xff]
  %v40 = vld [vmem:[%s0 + $0x88] sm:$0xf]
  %v41 = vld [vmem:[%s0 + $0x8c] sm:$0xff]
  %v42 = vld [vmem:[%s0 + $0x94] sm:$0xff]
  %v43 = vld [vmem:[%s0 + $0x9c] sm:$0xff]
  %v44 = vld [vmem:[%s0 + $0xa4] sm:$0xf]
  %v45 = vld [vmem:[%s0 + $0xa8] sm:$0xff]
  %v46 = vld [vmem:[%s0 + $0xb0] sm:$0xff]
  %v47 = vld [vmem:[%s0 + $0xb8] sm:$0xff]
  %v48 = vld [vmem:[%s0 + $0xc0] sm:$0xf]
  %v49 = vld [vmem:[%s0 + $0xc4] sm:$0xff]
  %v50 = vld [vmem:[%s0 + $0xcc] sm:$0xff]
  %v51 = vld [vmem:[%s0 + $0xd4] sm:$0xff]
  %v52 = vld [vmem:[%s0 + $0xdc] sm:$0xf]
  %v53 = vld [vmem:[%s0 + $0xe0] sm:$0xff]
  %v54 = vld [vmem:[%s0 + $0xe8] sm:$0xff]
  %v55 = vld [vmem:[%s0 + $0xf0] sm:$0xff]
  %v56 = vld [vmem:[%s0 + $0xf8] sm:$0xf]
  %v57 = vld [vmem:[%s0 + $0xfc] sm:$0xff]
  %v58 = vld [vmem:[%s0 + $0x104] sm:$0xff]
  %v59 = vld [vmem:[%s0 + $0x10c] sm:$0xff]
  %v60 = vld [vmem:[%s0 + $0x114] sm:$0xf]
  %v61 = vld [vmem:[%s0 + $0x118] sm:$0xff]
  %v62 = vld [vmem:[%s0 + $0x120] sm:$0xff]
  %v63 = vld [vmem:[%s0 + $0x128] sm:$0xff]
  %v64 = vld [vmem:[%s0 + $0x130] sm:$0xf]
  %v65 = vld [vmem:[%s0 + $0x134] sm:$0xff]
  %v66 = vld [vmem:[%s0 + $0x13c] sm:$0xff]
  %v67 = vld [vmem:[%s0 + $0x144] sm:$0xff]
  %v68 = vld [vmem:[%s0 + $0x14c] sm:$0xf]
  %v69 = vld [vmem:[%s0 + $0x150] sm:$0xff]
  %v70 = vld [vmem:[%s0 + $0x158] sm:$0xff]
  %v71 = vld [vmem:[%s0 + $0x160] sm:$0xff]
  %v72 = vld [vmem:[%s0 + $0x168] sm:$0xf]
  %v73 = vld [vmem:[%s0 + $0x16c] sm:$0xff]
  %v74 = vld [vmem:[%s0 + $0x174] sm:$0xff]
  %v75 = vld [vmem:[%s0 + $0x17c] sm:$0xff]
  %v76 = vld [vmem:[%s0 + $0x184] sm:$0xf]
  %v77 = vld [vmem:[%s0 + $0x188] sm:$0xff]
  %v78 = vld [vmem:[%s0 + $0x190] sm:$0xff]
  %v79 = vld [vmem:[%s0 + $0x198] sm:$0xff]
  %v80 = vld [vmem:[%s0 + $0x1a0] sm:$0xf]
  %v81 = vld [vmem:[%s0 + $0x1a4] sm:$0xff]
  %v82 = vld [vmem:[%s0 + $0x1ac] sm:$0xff]
  %v83 = vld [vmem:[%s0 + $0x1b4] sm:$0xff]
  %v84 = vld [vmem:[%s0 + $0x1bc] sm:$0xf]
  %v85 = vld [vmem:[%s1] sm:$0xf]
  %v86 = vld [vmem:[%s1 + $0x4] sm:$0xf]
  %v87 = vld [vmem:[%s1 + $0x8] sm:$0xf]
  %v88 = vld [vmem:[%s1 + $0xc] sm:$0xf]
  %v89 = vld [vmem:[%s1 + $0x10] sm:$0xf]
  %v90 = vld [vmem:[%s1 + $0x14] sm:$0xf]
  %v91 = vld [vmem:[%s1 + $0x18] sm:$0xf]
  %v92 = vld [vmem:[%s1 + $0x1c] sm:$0xf]
  %v93 = vld [vmem:[%s1 + $0x20] sm:$0xf]
  %v94 = vld [vmem:[%s1 + $0x24] sm:$0xf]
  %v95 = vld [vmem:[%s1 + $0x28] sm:$0xf]
  %v96 = vld [vmem:[%s1 + $0x2c] sm:$0xf]
  %v97 = vld [vmem:[%s1 + $0x30] sm:$0xf]
  %v98 = vld [vmem:[%s1 + $0x34] sm:$0xf]
  %v99 = vld [vmem:[%s1 + $0x38] sm:$0xf]
  %v100 = vld [vmem:[%s1 + $0x3c] sm:$0xf]
  %v101 = vld [vmem:[%s1 + $0x40] sm:$0xf]
  %v102 = vld [vmem:[%s1 + $0x44] sm:$0xf]
  %v103 = vld [vmem:[%s1 + $0x48] sm:$0xf]
  %v104 = vld [vmem:[%s1 + $0x4c] sm:$0xf]
  %v105 = vld [vmem:[%s1 + $0x50] sm:$0xf]
  %v106 = vld [vmem:[%s1 + $0x54] sm:$0xf]
  %v107 = vld [vmem:[%s1 + $0x58] sm:$0xf]
  %v108 = vld [vmem:[%s1 + $0x5c] sm:$0xf]
  %v109 = vld [vmem:[%s1 + $0x60] sm:$0xf]
  %v110 = vld [vmem:[%s1 + $0x64] sm:$0xf]
  %v111 = vld [vmem:[%s1 + $0x68] sm:$0xf]
  %v112 = vld [vmem:[%s1 + $0x6c] sm:$0xf]
  %v113 = vld [vmem:[%s1 + $0x70] sm:$0xf]
  %v114 = vld [vmem:[%s1 + $0x74] sm:$0xf]
  %v115 = vld [vmem:[%s1 + $0x78] sm:$0xf]
  %v116 = vld [vmem:[%s1 + $0x7c] sm:$0xf]
  %v117 = vld [vmem:[%s1 + $0x80] sm:$0xf]
  %v118 = vld [vmem:[%s1 + $0x84] sm:$0xf]
  %v119 = vld [vmem:[%s1 + $0x88] sm:$0xf]
  %v120 = vld [vmem:[%s1 + $0x8c] sm:$0xf]
  %v121 = vld [vmem:[%s1 + $0x90] sm:$0xf]
  %v122 = vld [vmem:[%s1 + $0x94] sm:$0xf]
  %v123 = vld [vmem:[%s1 + $0x98] sm:$0xf]
  %v124 = vld [vmem:[%s1 + $0x9c] sm:$0xf]
  %v125 = vld [vmem:[%s1 + $0xa0] sm:$0xf]
  %v126 = vld [vmem:[%s1 + $0xa4] sm:$0xf]
  %v127 = vld [vmem:[%s1 + $0xa8] sm:$0xf]
  %v128 = vld [vmem:[%s1 + $0xac] sm:$0xf]
  %v129 = vld [vmem:[%s1 + $0xb0] sm:$0xf]
  %v130 = vld [vmem:[%s1 + $0xb4] sm:$0xf]
  %v131 = vld [vmem:[%s1 + $0xb8] sm:$0xf]
  %v132 = vld [vmem:[%s1 + $0xbc] sm:$0xf]
  %v133 = vld [vmem:[%s1 + $0xc0] sm:$0xf]
  %v134 = vld [vmem:[%s1 + $0xc4] sm:$0xf]
  %v135 = vld [vmem:[%s1 + $0xc8] sm:$0xf]
  %v136 = vld [vmem:[%s1 + $0xcc] sm:$0xf]
  %v137 = vld [vmem:[%s1 + $0xd0] sm:$0xf]
  %v138 = vld [vmem:[%s1 + $0xd4] sm:$0xf]
  %v139 = vld [vmem:[%s1 + $0xd8] sm:$0xf]
  %v140 = vld [vmem:[%s1 + $0xdc] sm:$0xf]
  %v141 = vld [vmem:[%s1 + $0xe0] sm:$0xf]
  %v142 = vld [vmem:[%s1 + $0xe4] sm:$0xf]
  %v143 = vld [vmem:[%s1 + $0xe8] sm:$0xf]
  %v144 = vld [vmem:[%s1 + $0xec] sm:$0xf]
  %v145 = vld [vmem:[%s1 + $0xf0] sm:$0xf]
  %v146 = vld [vmem:[%s1 + $0xf4] sm:$0xf]
  %v147 = vld [vmem:[%s1 + $0xf8] sm:$0xf]
  %v148 = vld [vmem:[%s1 + $0xfc] sm:$0xf]
  %v149 = vld [vmem:[%s1 + $0x100] sm:$0xf]
  %v150 = vld [vmem:[%s1 + $0x104] sm:$0xf]
  %v151 = vld [vmem:[%s1 + $0x108] sm:$0xf]
  %v152 = vld [vmem:[%s1 + $0x10c] sm:$0xf]
  %v153 = vld [vmem:[%s1 + $0x110] sm:$0xf]
  %v154 = vld [vmem:[%s1 + $0x114] sm:$0xf]
  %v155 = vld [vmem:[%s1 + $0x118] sm:$0xf]
  %v156 = vld [vmem:[%s1 + $0x11c] sm:$0xf]
  %v157 = vld [vmem:[%s1 + $0x120] sm:$0xf]
  %v158 = vld [vmem:[%s1 + $0x124] sm:$0xf]
  %v159 = vld [vmem:[%s1 + $0x128] sm:$0xf]
  %v160 = vld [vmem:[%s1 + $0x12c] sm:$0xf]
  %v161 = vld [vmem:[%s1 + $0x130] sm:$0xf]
  %v162 = vld [vmem:[%s1 + $0x134] sm:$0xf]
  %v163 = vld [vmem:[%s1 + $0x138] sm:$0xf]
  %v164 = vld [vmem:[%s1 + $0x13c] sm:$0xf]
  %v165 = vld [vmem:[%s1 + $0x140] sm:$0xf]
  %v166 = vld [vmem:[%s1 + $0x144] sm:$0xf]
  %v167 = vld [vmem:[%s1 + $0x148] sm:$0xf]
  %v168 = vld [vmem:[%s1 + $0x14c] sm:$0xf]
  %v169 = vld [vmem:[%s1 + $0x150] sm:$0xf]
  %v170 = vld [vmem:[%s1 + $0x154] sm:$0xf]
  %v171 = vld [vmem:[%s1 + $0x158] sm:$0xf]
  %v172 = vld [vmem:[%s1 + $0x15c] sm:$0xf]
  %v173 = vld [vmem:[%s1 + $0x160] sm:$0xf]
  %v174 = vld [vmem:[%s1 + $0x164] sm:$0xf]
  %v175 = vld [vmem:[%s1 + $0x168] sm:$0xf]
  %v176 = vld [vmem:[%s1 + $0x16c] sm:$0xf]
  %v177 = vld [vmem:[%s1 + $0x170] sm:$0xf]
  %v178 = vld [vmem:[%s1 + $0x174] sm:$0xf]
  %v179 = vld [vmem:[%s1 + $0x178] sm:$0xf]
  %v180 = vld [vmem:[%s1 + $0x17c] sm:$0xf]
  %v181 = vld [vmem:[%s1 + $0x180] sm:$0xf]
  %v182 = vld [vmem:[%s1 + $0x184] sm:$0xf]
  %v183 = vld [vmem:[%s1 + $0x188] sm:$0xf]
  %v184 = vld [vmem:[%s1 + $0x18c] sm:$0xf]
  %v185 = vld [vmem:[%s1 + $0x190] sm:$0xf]
  %v186 = vld [vmem:[%s1 + $0x194] sm:$0xf]
  %v187 = vld [vmem:[%s1 + $0x198] sm:$0xf]
  %v188 = vld [vmem:[%s1 + $0x19c] sm:$0xf]
  %v189 = vld [vmem:[%s1 + $0x1a0] sm:$0xf]
  %v190 = vld [vmem:[%s1 + $0x1a4] sm:$0xf]
  %v191 = vld [vmem:[%s1 + $0x1a8] sm:$0xf]
  %v192 = vld [vmem:[%s1 + $0x1ac] sm:$0xf]
  %v193 = vld [vmem:[%s1 + $0x1b0] sm:$0xf]
  %v194 = vld [vmem:[%s1 + $0x1b4] sm:$0xf]
  %v195 = vld [vmem:[%s1 + $0x1b8] sm:$0xf]
  %v196 = vld [vmem:[%s1 + $0x1bc] sm:$0xf]
  %v197 = vld [vmem:[%s2] sm:$0x1]
  %v199 = vlaneseq
  %v200 = vshrl.u32 %v199, 7
  %v201 = vsub.s32 0, %v200
  %v202 = vrot.slane %v197, %v201
  %v268 = vunpack.c.l.b16 %v21
  %v269 = vunpack.c.h.b16 %v21
  %v270 = vunpack.c.l.b16 %v22
  %v271 = vunpack.c.h.b16 %v22
  %v272 = vunpack.c.l.b16 %v23
  %v273 = vunpack.c.h.b16 %v23
  %v274 = vunpack.c.l.b16 %v24
  %v275 = vunpack.c.l.b16 %v25
  %v276 = vunpack.c.h.b16 %v25
  %v277 = vunpack.c.l.b16 %v26
  %v278 = vunpack.c.h.b16 %v26
  %v279 = vunpack.c.l.b16 %v27
  %v280 = vunpack.c.h.b16 %v27
  %v281 = vunpack.c.l.b16 %v28
  %v282 = vunpack.c.l.b16 %v29
  %v283 = vunpack.c.h.b16 %v29
  %v284 = vunpack.c.l.b16 %v30
  %v285 = vunpack.c.h.b16 %v30
  %v286 = vunpack.c.l.b16 %v31
  %v287 = vunpack.c.h.b16 %v31
  %v288 = vunpack.c.l.b16 %v32
  %v289 = vunpack.c.l.b16 %v33
  %v290 = vunpack.c.h.b16 %v33
  %v291 = vunpack.c.l.b16 %v34
  %v292 = vunpack.c.h.b16 %v34
  %v293 = vunpack.c.l.b16 %v35
  %v294 = vunpack.c.h.b16 %v35
  %v295 = vunpack.c.l.b16 %v36
  %v296 = vunpack.c.l.b16 %v37
  %v297 = vunpack.c.h.b16 %v37
  %v298 = vunpack.c.l.b16 %v38
  %v299 = vunpack.c.h.b16 %v38
  %v300 = vunpack.c.l.b16 %v39
  %v301 = vunpack.c.h.b16 %v39
  %v302 = vunpack.c.l.b16 %v40
  %v303 = vunpack.c.l.b16 %v41
  %v304 = vunpack.c.h.b16 %v41
  %v305 = vunpack.c.l.b16 %v42
  %v306 = vunpack.c.h.b16 %v42
  %v307 = vunpack.c.l.b16 %v43
  %v308 = vunpack.c.h.b16 %v43
  %v309 = vunpack.c.l.b16 %v44
  %v310 = vunpack.c.l.b16 %v45
  %v311 = vunpack.c.h.b16 %v45
  %v312 = vunpack.c.l.b16 %v46
  %v313 = vunpack.c.h.b16 %v46
  %v314 = vunpack.c.l.b16 %v47
  %v315 = vunpack.c.h.b16 %v47
  %v316 = vunpack.c.l.b16 %v48
  %v317 = vunpack.c.l.b16 %v49
  %v318 = vunpack.c.h.b16 %v49
  %v319 = vunpack.c.l.b16 %v50
  %v320 = vunpack.c.h.b16 %v50
  %v321 = vunpack.c.l.b16 %v51
  %v322 = vunpack.c.h.b16 %v51
  %v323 = vunpack.c.l.b16 %v52
  %v324 = vunpack.c.l.b16 %v53
  %v325 = vunpack.c.h.b16 %v53
  %v326 = vunpack.c.l.b16 %v54
  %v327 = vunpack.c.h.b16 %v54
  %v328 = vunpack.c.l.b16 %v55
  %v329 = vunpack.c.h.b16 %v55
  %v330 = vunpack.c.l.b16 %v56
  %v331 = vunpack.c.l.b16 %v57
  %v332 = vunpack.c.h.b16 %v57
  %v333 = vunpack.c.l.b16 %v58
  %v334 = vunpack.c.h.b16 %v58
  %v335 = vunpack.c.l.b16 %v59
  %v336 = vunpack.c.h.b16 %v59
  %v337 = vunpack.c.l.b16 %v60
  %v338 = vunpack.c.l.b16 %v61
  %v339 = vunpack.c.h.b16 %v61
  %v340 = vunpack.c.l.b16 %v62
  %v341 = vunpack.c.h.b16 %v62
  %v342 = vunpack.c.l.b16 %v63
  %v343 = vunpack.c.h.b16 %v63
  %v344 = vunpack.c.l.b16 %v64
  %v345 = vunpack.c.l.b16 %v65
  %v346 = vunpack.c.h.b16 %v65
  %v347 = vunpack.c.l.b16 %v66
  %v348 = vunpack.c.h.b16 %v66
  %v349 = vunpack.c.l.b16 %v67
  %v350 = vunpack.c.h.b16 %v67
  %v351 = vunpack.c.l.b16 %v68
  %v352 = vunpack.c.l.b16 %v69
  %v353 = vunpack.c.h.b16 %v69
  %v354 = vunpack.c.l.b16 %v70
  %v355 = vunpack.c.h.b16 %v70
  %v356 = vunpack.c.l.b16 %v71
  %v357 = vunpack.c.h.b16 %v71
  %v358 = vunpack.c.l.b16 %v72
  %v359 = vunpack.c.l.b16 %v73
  %v360 = vunpack.c.h.b16 %v73
  %v361 = vunpack.c.l.b16 %v74
  %v362 = vunpack.c.h.b16 %v74
  %v363 = vunpack.c.l.b16 %v75
  %v364 = vunpack.c.h.b16 %v75
  %v365 = vunpack.c.l.b16 %v76
  %v366 = vunpack.c.l.b16 %v77
  %v367 = vunpack.c.h.b16 %v77
  %v368 = vunpack.c.l.b16 %v78
  %v369 = vunpack.c.h.b16 %v78
  %v370 = vunpack.c.l.b16 %v79
  %v371 = vunpack.c.h.b16 %v79
  %v372 = vunpack.c.l.b16 %v80
  %v373 = vunpack.c.l.b16 %v81
  %v374 = vunpack.c.h.b16 %v81
  %v375 = vunpack.c.l.b16 %v82
  %v376 = vunpack.c.h.b16 %v82
  %v377 = vunpack.c.l.b16 %v83
  %v378 = vunpack.c.h.b16 %v83
  %v379 = vunpack.c.l.b16 %v84
  %v380 = vpack.c.b16 %v275, %v268
  %v381 = vpack.c.b16 %v276, %v269
  %v382 = vpack.c.b16 %v277, %v270
  %v383 = vpack.c.b16 %v278, %v271
  %v384 = vpack.c.b16 %v279, %v272
  %v385 = vpack.c.b16 %v280, %v273
  %v386 = vpack.c.b16 %v281, %v274
  %v387 = vpack.c.b16 %v289, %v282
  %v388 = vpack.c.b16 %v290, %v283
  %v389 = vpack.c.b16 %v291, %v284
  %v390 = vpack.c.b16 %v292, %v285
  %v391 = vpack.c.b16 %v293, %v286
  %v392 = vpack.c.b16 %v294, %v287
  %v393 = vpack.c.b16 %v295, %v288
  %v394 = vpack.c.b16 %v303, %v296
  %v395 = vpack.c.b16 %v304, %v297
  %v396 = vpack.c.b16 %v305, %v298
  %v397 = vpack.c.b16 %v306, %v299
  %v398 = vpack.c.b16 %v307, %v300
  %v399 = vpack.c.b16 %v308, %v301
  %v400 = vpack.c.b16 %v309, %v302
  %v401 = vpack.c.b16 %v317, %v310
  %v402 = vpack.c.b16 %v318, %v311
  %v403 = vpack.c.b16 %v319, %v312
  %v404 = vpack.c.b16 %v320, %v313
  %v405 = vpack.c.b16 %v321, %v314
  %v406 = vpack.c.b16 %v322, %v315
  %v407 = vpack.c.b16 %v323, %v316
  %v408 = vpack.c.b16 %v331, %v324
  %v409 = vpack.c.b16 %v332, %v325
  %v410 = vpack.c.b16 %v333, %v326
  %v411 = vpack.c.b16 %v334, %v327
  %v412 = vpack.c.b16 %v335, %v328
  %v413 = vpack.c.b16 %v336, %v329
  %v414 = vpack.c.b16 %v337, %v330
  %v415 = vpack.c.b16 %v345, %v338
  %v416 = vpack.c.b16 %v346, %v339
  %v417 = vpack.c.b16 %v347, %v340
  %v418 = vpack.c.b16 %v348, %v341
  %v419 = vpack.c.b16 %v349, %v342
  %v420 = vpack.c.b16 %v350, %v343
  %v421 = vpack.c.b16 %v351, %v344
  %v422 = vpack.c.b16 %v359, %v352
  %v423 = vpack.c.b16 %v360, %v353
  %v424 = vpack.c.b16 %v361, %v354
  %v425 = vpack.c.b16 %v362, %v355
  %v426 = vpack.c.b16 %v363, %v356
  %v427 = vpack.c.b16 %v364, %v357
  %v428 = vpack.c.b16 %v365, %v358
  %v429 = vpack.c.b16 %v373, %v366
  %v430 = vpack.c.b16 %v374, %v367
  %v431 = vpack.c.b16 %v375, %v368
  %v432 = vpack.c.b16 %v376, %v369
  %v433 = vpack.c.b16 %v377, %v370
  %v434 = vpack.c.b16 %v378, %v371
  %v435 = vpack.c.b16 %v379, %v372
  %v604 = vunpack.c.l.b16 %v85
  %v605 = vunpack.c.l.b16 %v86
  %v606 = vunpack.c.l.b16 %v87
  %v607 = vunpack.c.l.b16 %v88
  %v608 = vunpack.c.l.b16 %v89
  %v609 = vunpack.c.l.b16 %v90
  %v610 = vunpack.c.l.b16 %v91
  %v611 = vunpack.c.l.b16 %v92
  %v612 = vunpack.c.l.b16 %v93
  %v613 = vunpack.c.l.b16 %v94
  %v614 = vunpack.c.l.b16 %v95
  %v615 = vunpack.c.l.b16 %v96
  %v616 = vunpack.c.l.b16 %v97
  %v617 = vunpack.c.l.b16 %v98
  %v618 = vunpack.c.l.b16 %v99
  %v619 = vunpack.c.l.b16 %v100
  %v620 = vunpack.c.l.b16 %v101
  %v621 = vunpack.c.l.b16 %v102
  %v622 = vunpack.c.l.b16 %v103
  %v623 = vunpack.c.l.b16 %v104
  %v624 = vunpack.c.l.b16 %v105
  %v625 = vunpack.c.l.b16 %v106
  %v626 = vunpack.c.l.b16 %v107
  %v627 = vunpack.c.l.b16 %v108
  %v628 = vunpack.c.l.b16 %v109
  %v629 = vunpack.c.l.b16 %v110
  %v630 = vunpack.c.l.b16 %v111
  %v631 = vunpack.c.l.b16 %v112
  %v632 = vunpack.c.l.b16 %v113
  %v633 = vunpack.c.l.b16 %v114
  %v634 = vunpack.c.l.b16 %v115
  %v635 = vunpack.c.l.b16 %v116
  %v636 = vunpack.c.l.b16 %v117
  %v637 = vunpack.c.l.b16 %v118
  %v638 = vunpack.c.l.b16 %v119
  %v639 = vunpack.c.l.b16 %v120
  %v640 = vunpack.c.l.b16 %v121
  %v641 = vunpack.c.l.b16 %v122
  %v642 = vunpack.c.l.b16 %v123
  %v643 = vunpack.c.l.b16 %v124
  %v644 = vunpack.c.l.b16 %v125
  %v645 = vunpack.c.l.b16 %v126
  %v646 = vunpack.c.l.b16 %v127
  %v647 = vunpack.c.l.b16 %v128
  %v648 = vunpack.c.l.b16 %v129
  %v649 = vunpack.c.l.b16 %v130
  %v650 = vunpack.c.l.b16 %v131
  %v651 = vunpack.c.l.b16 %v132
  %v652 = vunpack.c.l.b16 %v133
  %v653 = vunpack.c.l.b16 %v134
  %v654 = vunpack.c.l.b16 %v135
  %v655 = vunpack.c.l.b16 %v136
  %v656 = vunpack.c.l.b16 %v137
  %v657 = vunpack.c.l.b16 %v138
  %v658 = vunpack.c.l.b16 %v139
  %v659 = vunpack.c.l.b16 %v140
  %v660 = vunpack.c.l.b16 %v141
  %v661 = vunpack.c.l.b16 %v142
  %v662 = vunpack.c.l.b16 %v143
  %v663 = vunpack.c.l.b16 %v144
  %v664 = vunpack.c.l.b16 %v145
  %v665 = vunpack.c.l.b16 %v146
  %v666 = vunpack.c.l.b16 %v147
  %v667 = vunpack.c.l.b16 %v148
  %v668 = vunpack.c.l.b16 %v149
  %v669 = vunpack.c.l.b16 %v150
  %v670 = vunpack.c.l.b16 %v151
  %v671 = vunpack.c.l.b16 %v152
  %v672 = vunpack.c.l.b16 %v153
  %v673 = vunpack.c.l.b16 %v154
  %v674 = vunpack.c.l.b16 %v155
  %v675 = vunpack.c.l.b16 %v156
  %v676 = vunpack.c.l.b16 %v157
  %v677 = vunpack.c.l.b16 %v158
  %v678 = vunpack.c.l.b16 %v159
  %v679 = vunpack.c.l.b16 %v160
  %v680 = vunpack.c.l.b16 %v161
  %v681 = vunpack.c.l.b16 %v162
  %v682 = vunpack.c.l.b16 %v163
  %v683 = vunpack.c.l.b16 %v164
  %v684 = vunpack.c.l.b16 %v165
  %v685 = vunpack.c.l.b16 %v166
  %v686 = vunpack.c.l.b16 %v167
  %v687 = vunpack.c.l.b16 %v168
  %v688 = vunpack.c.l.b16 %v169
  %v689 = vunpack.c.l.b16 %v170
  %v690 = vunpack.c.l.b16 %v171
  %v691 = vunpack.c.l.b16 %v172
  %v692 = vunpack.c.l.b16 %v173
  %v693 = vunpack.c.l.b16 %v174
  %v694 = vunpack.c.l.b16 %v175
  %v695 = vunpack.c.l.b16 %v176
  %v696 = vunpack.c.l.b16 %v177
  %v697 = vunpack.c.l.b16 %v178
  %v698 = vunpack.c.l.b16 %v179
  %v699 = vunpack.c.l.b16 %v180
  %v700 = vunpack.c.l.b16 %v181
  %v701 = vunpack.c.l.b16 %v182
  %v702 = vunpack.c.l.b16 %v183
  %v703 = vunpack.c.l.b16 %v184
  %v704 = vunpack.c.l.b16 %v185
  %v705 = vunpack.c.l.b16 %v186
  %v706 = vunpack.c.l.b16 %v187
  %v707 = vunpack.c.l.b16 %v188
  %v708 = vunpack.c.l.b16 %v189
  %v709 = vunpack.c.l.b16 %v190
  %v710 = vunpack.c.l.b16 %v191
  %v711 = vunpack.c.l.b16 %v192
  %v712 = vunpack.c.l.b16 %v193
  %v713 = vunpack.c.l.b16 %v194
  %v714 = vunpack.c.l.b16 %v195
  %v715 = vunpack.c.l.b16 %v196
  %v716 = vpack.c.b16 %v605, %v604
  %v717 = vpack.c.b16 %v607, %v606
  %v718 = vpack.c.b16 %v609, %v608
  %v719 = vpack.c.b16 %v611, %v610
  %v720 = vpack.c.b16 %v613, %v612
  %v721 = vpack.c.b16 %v615, %v614
  %v722 = vpack.c.b16 %v617, %v616
  %v723 = vpack.c.b16 %v619, %v618
  %v724 = vpack.c.b16 %v621, %v620
  %v725 = vpack.c.b16 %v623, %v622
  %v726 = vpack.c.b16 %v625, %v624
  %v727 = vpack.c.b16 %v627, %v626
  %v728 = vpack.c.b16 %v629, %v628
  %v729 = vpack.c.b16 %v631, %v630
  %v730 = vpack.c.b16 %v633, %v632
  %v731 = vpack.c.b16 %v635, %v634
  %v732 = vpack.c.b16 %v637, %v636
  %v733 = vpack.c.b16 %v639, %v638
  %v734 = vpack.c.b16 %v641, %v640
  %v735 = vpack.c.b16 %v643, %v642
  %v736 = vpack.c.b16 %v645, %v644
  %v737 = vpack.c.b16 %v647, %v646
  %v738 = vpack.c.b16 %v649, %v648
  %v739 = vpack.c.b16 %v651, %v650
  %v740 = vpack.c.b16 %v653, %v652
  %v741 = vpack.c.b16 %v655, %v654
  %v742 = vpack.c.b16 %v657, %v656
  %v743 = vpack.c.b16 %v659, %v658
  %v744 = vpack.c.b16 %v661, %v660
  %v745 = vpack.c.b16 %v663, %v662
  %v746 = vpack.c.b16 %v665, %v664
  %v747 = vpack.c.b16 %v667, %v666
  %v748 = vpack.c.b16 %v669, %v668
  %v749 = vpack.c.b16 %v671, %v670
  %v750 = vpack.c.b16 %v673, %v672
  %v751 = vpack.c.b16 %v675, %v674
  %v752 = vpack.c.b16 %v677, %v676
  %v753 = vpack.c.b16 %v679, %v678
  %v754 = vpack.c.b16 %v681, %v680
  %v755 = vpack.c.b16 %v683, %v682
  %v756 = vpack.c.b16 %v685, %v684
  %v757 = vpack.c.b16 %v687, %v686
  %v758 = vpack.c.b16 %v689, %v688
  %v759 = vpack.c.b16 %v691, %v690
  %v760 = vpack.c.b16 %v693, %v692
  %v761 = vpack.c.b16 %v695, %v694
  %v762 = vpack.c.b16 %v697, %v696
  %v763 = vpack.c.b16 %v699, %v698
  %v764 = vpack.c.b16 %v701, %v700
  %v765 = vpack.c.b16 %v703, %v702
  %v766 = vpack.c.b16 %v705, %v704
  %v767 = vpack.c.b16 %v707, %v706
  %v768 = vpack.c.b16 %v709, %v708
  %v769 = vpack.c.b16 %v711, %v710
  %v770 = vpack.c.b16 %v713, %v712
  %v771 = vpack.c.b16 %v715, %v714
  %828 = vmatprep.subr.bf16.mxu0 0
  %829 = vmatpush1.bf16.msra.mxu0 %v723
  %830 = vmatprep.subr.bf16.mxu0 0
  %831 = vmatpush1.bf16.msra.mxu0 %v722
  %832 = vmatprep.subr.bf16.mxu0 0
  %833 = vmatpush1.bf16.msra.mxu0 %v721
  %834 = vmatprep.subr.bf16.mxu0 0
  %835 = vmatpush1.bf16.msra.mxu0 %v720
  %836 = vmatprep.subr.bf16.mxu0 0
  %837 = vmatpush1.bf16.msra.mxu0 %v719
  %838 = vmatprep.subr.bf16.mxu0 0
  %839 = vmatpush1.bf16.msra.mxu0 %v718
  %840 = vmatprep.subr.bf16.mxu0 0
  %841 = vmatpush1.bf16.msra.mxu0 %v717
  %842 = vmatprep.subr.bf16.mxu0 0
  %843 = vmatpush1.bf16.msra.mxu0 %v716
  %844 = vmatprep.subr.bf16.mxu0 0
  %845 = vmatpush2.bf16.msra.mxu0 %v731
  %846 = vmatprep.subr.bf16.mxu0 0
  %847 = vmatpush2.bf16.msra.mxu0 %v730
  %848 = vmatprep.subr.bf16.mxu0 0
  %849 = vmatpush2.bf16.msra.mxu0 %v729
  %850 = vmatprep.subr.bf16.mxu0 0
  %851 = vmatpush2.bf16.msra.mxu0 %v728
  %852 = vmatprep.subr.bf16.mxu0 0
  %853 = vmatpush2.bf16.msra.mxu0 %v727
  %854 = vmatprep.subr.bf16.mxu0 0
  %855 = vmatpush2.bf16.msra.mxu0 %v726
  %856 = vmatprep.subr.bf16.mxu0 0
  %857 = vmatpush2.bf16.msra.mxu0 %v725
  %858 = vmatprep.subr.bf16.mxu0 0
  %859 = vmatpush2.bf16.msra.mxu0 %v724
  %860 = vmatprep.mubr.bf16.mxu0 %v381
  %861 = vmatmul.mubr.bf16.gmra.mxu0 %v380
  %v862 = vpop.f32.mrf.mxu0
  %v863 = vadd.f32 %v202, %v862
  %v864 = vpop.f32.mrf.mxu0
  %v865 = vpop.f32.mrf.mxu0
  %v866 = vadd.f32 %v202, %v865
  %v867 = vpop.f32.mrf.mxu0
  %868 = vmatprep.mubr.bf16.mxu0 %v388
  %869 = vmatmul.mubr.bf16.gmra.mxu0 %v387
  %v870 = vpop.f32.mrf.mxu0
  %v871 = vadd.f32 %v202, %v870
  %v872 = vpop.f32.mrf.mxu0
  %v873 = vpop.f32.mrf.mxu0
  %v874 = vadd.f32 %v202, %v873
  %v875 = vpop.f32.mrf.mxu0
  %876 = vmatprep.mubr.bf16.mxu0 %v395
  %877 = vmatmul.mubr.bf16.gmra.mxu0 %v394
  %v878 = vpop.f32.mrf.mxu0
  %v879 = vadd.f32 %v202, %v878
  %v880 = vpop.f32.mrf.mxu0
  %v881 = vpop.f32.mrf.mxu0
  %v882 = vadd.f32 %v202, %v881
  %v883 = vpop.f32.mrf.mxu0
  %884 = vmatprep.mubr.bf16.mxu0 %v402
  %885 = vmatmul.mubr.bf16.gmra.mxu0 %v401
  %v886 = vpop.f32.mrf.mxu0
  %v887 = vadd.f32 %v202, %v886
  %v888 = vpop.f32.mrf.mxu0
  %v889 = vpop.f32.mrf.mxu0
  %v890 = vadd.f32 %v202, %v889
  %v891 = vpop.f32.mrf.mxu0
  %892 = vmatprep.mubr.bf16.mxu0 %v409
  %893 = vmatmul.mubr.bf16.gmra.mxu0 %v408
  %v894 = vpop.f32.mrf.mxu0
  %v895 = vadd.f32 %v202, %v894
  %v896 = vpop.f32.mrf.mxu0
  %v897 = vpop.f32.mrf.mxu0
  %v898 = vadd.f32 %v202, %v897
  %v899 = vpop.f32.mrf.mxu0
  %900 = vmatprep.mubr.bf16.mxu0 %v416
  %901 = vmatmul.mubr.bf16.gmra.mxu0 %v415
  %v902 = vpop.f32.mrf.mxu0
  %v903 = vadd.f32 %v202, %v902
  %v904 = vpop.f32.mrf.mxu0
  %v905 = vpop.f32.mrf.mxu0
  %v906 = vadd.f32 %v202, %v905
  %v907 = vpop.f32.mrf.mxu0
  %908 = vmatprep.mubr.bf16.mxu0 %v423
  %909 = vmatmul.mubr.bf16.gmra.mxu0 %v422
  %v910 = vpop.f32.mrf.mxu0
  %v911 = vadd.f32 %v202, %v910
  %v912 = vpop.f32.mrf.mxu0
  %v913 = vpop.f32.mrf.mxu0
  %v914 = vadd.f32 %v202, %v913
  %v915 = vpop.f32.mrf.mxu0
  %916 = vmatprep.mubr.bf16.mxu0 %v430
  %917 = vmatmul.mubr.bf16.gmra.mxu0 %v429
  %v918 = vpop.f32.mrf.mxu0
  %v919 = vadd.f32 %v202, %v918
  %v920 = vpop.f32.mrf.mxu0
  %v921 = vpop.f32.mrf.mxu0
  %v922 = vadd.f32 %v202, %v921
  %v923 = vpop.f32.mrf.mxu0
  %924 = vdwg.mxu0
  %925 = vmatprep.subr.bf16.mxu0 0
  %926 = vmatpush1.bf16.msra.mxu0 %v739
  %927 = vmatprep.subr.bf16.mxu0 0
  %928 = vmatpush1.bf16.msra.mxu0 %v738
  %929 = vmatprep.subr.bf16.mxu0 0
  %930 = vmatpush1.bf16.msra.mxu0 %v737
  %931 = vmatprep.subr.bf16.mxu0 0
  %932 = vmatpush1.bf16.msra.mxu0 %v736
  %933 = vmatprep.subr.bf16.mxu0 0
  %934 = vmatpush1.bf16.msra.mxu0 %v735
  %935 = vmatprep.subr.bf16.mxu0 0
  %936 = vmatpush1.bf16.msra.mxu0 %v734
  %937 = vmatprep.subr.bf16.mxu0 0
  %938 = vmatpush1.bf16.msra.mxu0 %v733
  %939 = vmatprep.subr.bf16.mxu0 0
  %940 = vmatpush1.bf16.msra.mxu0 %v732
  %941 = vmatprep.subr.bf16.mxu0 0
  %942 = vmatpush2.bf16.msra.mxu0 %v747
  %943 = vmatprep.subr.bf16.mxu0 0
  %944 = vmatpush2.bf16.msra.mxu0 %v746
  %945 = vmatprep.subr.bf16.mxu0 0
  %946 = vmatpush2.bf16.msra.mxu0 %v745
  %947 = vmatprep.subr.bf16.mxu0 0
  %948 = vmatpush2.bf16.msra.mxu0 %v744
  %949 = vmatprep.subr.bf16.mxu0 0
  %950 = vmatpush2.bf16.msra.mxu0 %v743
  %951 = vmatprep.subr.bf16.mxu0 0
  %952 = vmatpush2.bf16.msra.mxu0 %v742
  %953 = vmatprep.subr.bf16.mxu0 0
  %954 = vmatpush2.bf16.msra.mxu0 %v741
  %955 = vmatprep.subr.bf16.mxu0 0
  %956 = vmatpush2.bf16.msra.mxu0 %v740
  %957 = vmatprep.mubr.bf16.mxu0 %v383
  %958 = vmatmul.mubr.bf16.gmra.mxu0 %v382
  %v959 = vpop.f32.mrf.mxu0
  %v960 = vadd.f32 %v863, %v959
  %v961 = vpop.f32.mrf.mxu0
  %v962 = vpop.f32.mrf.mxu0
  %v963 = vadd.f32 %v866, %v962
  %v964 = vpop.f32.mrf.mxu0
  %965 = vmatprep.mubr.bf16.mxu0 %v390
  %966 = vmatmul.mubr.bf16.gmra.mxu0 %v389
  %v967 = vpop.f32.mrf.mxu0
  %v968 = vadd.f32 %v871, %v967
  %v969 = vpop.f32.mrf.mxu0
  %v970 = vpop.f32.mrf.mxu0
  %v971 = vadd.f32 %v874, %v970
  %v972 = vpop.f32.mrf.mxu0
  %973 = vmatprep.mubr.bf16.mxu0 %v397
  %974 = vmatmul.mubr.bf16.gmra.mxu0 %v396
  %v975 = vpop.f32.mrf.mxu0
  %v976 = vadd.f32 %v879, %v975
  %v977 = vpop.f32.mrf.mxu0
  %v978 = vpop.f32.mrf.mxu0
  %v979 = vadd.f32 %v882, %v978
  %v980 = vpop.f32.mrf.mxu0
  %981 = vmatprep.mubr.bf16.mxu0 %v404
  %982 = vmatmul.mubr.bf16.gmra.mxu0 %v403
  %v983 = vpop.f32.mrf.mxu0
  %v984 = vadd.f32 %v887, %v983
  %v985 = vpop.f32.mrf.mxu0
  %v986 = vpop.f32.mrf.mxu0
  %v987 = vadd.f32 %v890, %v986
  %v988 = vpop.f32.mrf.mxu0
  %989 = vmatprep.mubr.bf16.mxu0 %v411
  %990 = vmatmul.mubr.bf16.gmra.mxu0 %v410
  %v991 = vpop.f32.mrf.mxu0
  %v992 = vadd.f32 %v895, %v991
  %v993 = vpop.f32.mrf.mxu0
  %v994 = vpop.f32.mrf.mxu0
  %v995 = vadd.f32 %v898, %v994
  %v996 = vpop.f32.mrf.mxu0
  %997 = vmatprep.mubr.bf16.mxu0 %v418
  %998 = vmatmul.mubr.bf16.gmra.mxu0 %v417
  %v999 = vpop.f32.mrf.mxu0
  %v1000 = vadd.f32 %v903, %v999
  %v1001 = vpop.f32.mrf.mxu0
  %v1002 = vpop.f32.mrf.mxu0
  %v1003 = vadd.f32 %v906, %v1002
  %v1004 = vpop.f32.mrf.mxu0
  %1005 = vmatprep.mubr.bf16.mxu0 %v425
  %1006 = vmatmul.mubr.bf16.gmra.mxu0 %v424
  %v1007 = vpop.f32.mrf.mxu0
  %v1008 = vadd.f32 %v911, %v1007
  %v1009 = vpop.f32.mrf.mxu0
  %v1010 = vpop.f32.mrf.mxu0
  %v1011 = vadd.f32 %v914, %v1010
  %v1012 = vpop.f32.mrf.mxu0
  %1013 = vmatprep.mubr.bf16.mxu0 %v432
  %1014 = vmatmul.mubr.bf16.gmra.mxu0 %v431
  %v1015 = vpop.f32.mrf.mxu0
  %v1016 = vadd.f32 %v919, %v1015
  %v1017 = vpop.f32.mrf.mxu0
  %v1018 = vpop.f32.mrf.mxu0
  %v1019 = vadd.f32 %v922, %v1018
  %v1020 = vpop.f32.mrf.mxu0
  %1021 = vdwg.mxu0
  %1022 = vmatprep.subr.bf16.mxu0 0
  %1023 = vmatpush1.bf16.msra.mxu0 %v755
  %1024 = vmatprep.subr.bf16.mxu0 0
  %1025 = vmatpush1.bf16.msra.mxu0 %v754
  %1026 = vmatprep.subr.bf16.mxu0 0
  %1027 = vmatpush1.bf16.msra.mxu0 %v753
  %1028 = vmatprep.subr.bf16.mxu0 0
  %1029 = vmatpush1.bf16.msra.mxu0 %v752
  %1030 = vmatprep.subr.bf16.mxu0 0
  %1031 = vmatpush1.bf16.msra.mxu0 %v751
  %1032 = vmatprep.subr.bf16.mxu0 0
  %1033 = vmatpush1.bf16.msra.mxu0 %v750
  %1034 = vmatprep.subr.bf16.mxu0 0
  %1035 = vmatpush1.bf16.msra.mxu0 %v749
  %1036 = vmatprep.subr.bf16.mxu0 0
  %1037 = vmatpush1.bf16.msra.mxu0 %v748
  %1038 = vmatprep.subr.bf16.mxu0 0
  %1039 = vmatpush2.bf16.msra.mxu0 %v763
  %1040 = vmatprep.subr.bf16.mxu0 0
  %1041 = vmatpush2.bf16.msra.mxu0 %v762
  %1042 = vmatprep.subr.bf16.mxu0 0
  %1043 = vmatpush2.bf16.msra.mxu0 %v761
  %1044 = vmatprep.subr.bf16.mxu0 0
  %1045 = vmatpush2.bf16.msra.mxu0 %v760
  %1046 = vmatprep.subr.bf16.mxu0 0
  %1047 = vmatpush2.bf16.msra.mxu0 %v759
  %1048 = vmatprep.subr.bf16.mxu0 0
  %1049 = vmatpush2.bf16.msra.mxu0 %v758
  %1050 = vmatprep.subr.bf16.mxu0 0
  %1051 = vmatpush2.bf16.msra.mxu0 %v757
  %1052 = vmatprep.subr.bf16.mxu0 0
  %1053 = vmatpush2.bf16.msra.mxu0 %v756
  %1054 = vmatprep.mubr.bf16.mxu0 %v385
  %1055 = vmatmul.mubr.bf16.gmra.mxu0 %v384
  %v1056 = vpop.f32.mrf.mxu0
  %v1057 = vadd.f32 %v960, %v1056
  %v1058 = vpop.f32.mrf.mxu0
  %v1059 = vpop.f32.mrf.mxu0
  %v1060 = vadd.f32 %v963, %v1059
  %v1061 = vpop.f32.mrf.mxu0
  %1062 = vmatprep.mubr.bf16.mxu0 %v392
  %1063 = vmatmul.mubr.bf16.gmra.mxu0 %v391
  %v1064 = vpop.f32.mrf.mxu0
  %v1065 = vadd.f32 %v968, %v1064
  %v1066 = vpop.f32.mrf.mxu0
  %v1067 = vpop.f32.mrf.mxu0
  %v1068 = vadd.f32 %v971, %v1067
  %v1069 = vpop.f32.mrf.mxu0
  %1070 = vmatprep.mubr.bf16.mxu0 %v399
  %1071 = vmatmul.mubr.bf16.gmra.mxu0 %v398
  %v1072 = vpop.f32.mrf.mxu0
  %v1073 = vadd.f32 %v976, %v1072
  %v1074 = vpop.f32.mrf.mxu0
  %v1075 = vpop.f32.mrf.mxu0
  %v1076 = vadd.f32 %v979, %v1075
  %v1077 = vpop.f32.mrf.mxu0
  %1078 = vmatprep.mubr.bf16.mxu0 %v406
  %1079 = vmatmul.mubr.bf16.gmra.mxu0 %v405
  %v1080 = vpop.f32.mrf.mxu0
  %v1081 = vadd.f32 %v984, %v1080
  %v1082 = vpop.f32.mrf.mxu0
  %v1083 = vpop.f32.mrf.mxu0
  %v1084 = vadd.f32 %v987, %v1083
  %v1085 = vpop.f32.mrf.mxu0
  %1086 = vmatprep.mubr.bf16.mxu0 %v413
  %1087 = vmatmul.mubr.bf16.gmra.mxu0 %v412
  %v1088 = vpop.f32.mrf.mxu0
  %v1089 = vadd.f32 %v992, %v1088
  %v1090 = vpop.f32.mrf.mxu0
  %v1091 = vpop.f32.mrf.mxu0
  %v1092 = vadd.f32 %v995, %v1091
  %v1093 = vpop.f32.mrf.mxu0
  %1094 = vmatprep.mubr.bf16.mxu0 %v420
  %1095 = vmatmul.mubr.bf16.gmra.mxu0 %v419
  %v1096 = vpop.f32.mrf.mxu0
  %v1097 = vadd.f32 %v1000, %v1096
  %v1098 = vpop.f32.mrf.mxu0
  %v1099 = vpop.f32.mrf.mxu0
  %v1100 = vadd.f32 %v1003, %v1099
  %v1101 = vpop.f32.mrf.mxu0
  %1102 = vmatprep.mubr.bf16.mxu0 %v427
  %1103 = vmatmul.mubr.bf16.gmra.mxu0 %v426
  %v1104 = vpop.f32.mrf.mxu0
  %v1105 = vadd.f32 %v1008, %v1104
  %v1106 = vpop.f32.mrf.mxu0
  %v1107 = vpop.f32.mrf.mxu0
  %v1108 = vadd.f32 %v1011, %v1107
  %v1109 = vpop.f32.mrf.mxu0
  %1110 = vmatprep.mubr.bf16.mxu0 %v434
  %1111 = vmatmul.mubr.bf16.gmra.mxu0 %v433
  %v1112 = vpop.f32.mrf.mxu0
  %v1113 = vadd.f32 %v1016, %v1112
  %v1114 = vpop.f32.mrf.mxu0
  %v1115 = vpop.f32.mrf.mxu0
  %v1116 = vadd.f32 %v1019, %v1115
  %v1117 = vpop.f32.mrf.mxu0
  %1118 = vdwg.mxu0
  %1119 = vmatprep.subr.bf16.mxu0 0
  %1120 = vmatpush1.bf16.msra.mxu0 %v771
  %1121 = vmatprep.subr.bf16.mxu0 0
  %1122 = vmatpush1.bf16.msra.mxu0 %v770
  %1123 = vmatprep.subr.bf16.mxu0 0
  %1124 = vmatpush1.bf16.msra.mxu0 %v769
  %1125 = vmatprep.subr.bf16.mxu0 0
  %1126 = vmatpush1.bf16.msra.mxu0 %v768
  %1127 = vmatprep.subr.bf16.mxu0 0
  %1128 = vmatpush1.bf16.msra.mxu0 %v767
  %1129 = vmatprep.subr.bf16.mxu0 0
  %1130 = vmatpush1.bf16.msra.mxu0 %v766
  %1131 = vmatprep.subr.bf16.mxu0 0
  %1132 = vmatpush1.bf16.msra.mxu0 %v765
  %1133 = vmatprep.subr.bf16.mxu0 0
  %1134 = vmatpush1.bf16.msra.mxu0 %v764
  %1135 = vmatprep.subr.bf16.mxu0 0
  %1136 = vmatpush2.bf16.msra.mxu0 0
  %1137 = vmatprep.subr.bf16.mxu0 0
  %1138 = vmatpush2.bf16.msra.mxu0 0
  %1139 = vmatprep.subr.bf16.mxu0 0
  %1140 = vmatpush2.bf16.msra.mxu0 0
  %1141 = vmatprep.subr.bf16.mxu0 0
  %1142 = vmatpush2.bf16.msra.mxu0 0
  %1143 = vmatprep.subr.bf16.mxu0 0
  %1144 = vmatpush2.bf16.msra.mxu0 0
  %1145 = vmatprep.subr.bf16.mxu0 0
  %1146 = vmatpush2.bf16.msra.mxu0 0
  %1147 = vmatprep.subr.bf16.mxu0 0
  %1148 = vmatpush2.bf16.msra.mxu0 0
  %1149 = vmatprep.subr.bf16.mxu0 0
  %1150 = vmatpush2.bf16.msra.mxu0 0
  %1151 = vmatprep.mubr.bf16.mxu0 0
  %1152 = vmatmul.mubr.bf16.gmra.mxu0 %v386
  %v1153 = vpop.f32.mrf.mxu0
  %v1154 = vadd.f32 %v1057, %v1153
  %v1155 = vpop.f32.mrf.mxu0
  %v1156 = vpop.f32.mrf.mxu0
  %v1157 = vadd.f32 %v1060, %v1156
  %v1158 = vpop.f32.mrf.mxu0
  %1159 = vmatprep.mubr.bf16.mxu0 0
  %1160 = vmatmul.mubr.bf16.gmra.mxu0 %v393
  %v1161 = vpop.f32.mrf.mxu0
  %v1162 = vadd.f32 %v1065, %v1161
  %v1163 = vpop.f32.mrf.mxu0
  %v1164 = vpop.f32.mrf.mxu0
  %v1165 = vadd.f32 %v1068, %v1164
  %v1166 = vpop.f32.mrf.mxu0
  %1167 = vmatprep.mubr.bf16.mxu0 0
  %1168 = vmatmul.mubr.bf16.gmra.mxu0 %v400
  %v1169 = vpop.f32.mrf.mxu0
  %v1170 = vadd.f32 %v1073, %v1169
  %v1171 = vpop.f32.mrf.mxu0
  %v1172 = vpop.f32.mrf.mxu0
  %v1173 = vadd.f32 %v1076, %v1172
  %v1174 = vpop.f32.mrf.mxu0
  %1175 = vmatprep.mubr.bf16.mxu0 0
  %1176 = vmatmul.mubr.bf16.gmra.mxu0 %v407
  %v1177 = vpop.f32.mrf.mxu0
  %v1178 = vadd.f32 %v1081, %v1177
  %v1179 = vpop.f32.mrf.mxu0
  %v1180 = vpop.f32.mrf.mxu0
  %v1181 = vadd.f32 %v1084, %v1180
  %v1182 = vpop.f32.mrf.mxu0
  %1183 = vmatprep.mubr.bf16.mxu0 0
  %1184 = vmatmul.mubr.bf16.gmra.mxu0 %v414
  %v1185 = vpop.f32.mrf.mxu0
  %v1186 = vadd.f32 %v1089, %v1185
  %v1187 = vpop.f32.mrf.mxu0
  %v1188 = vpop.f32.mrf.mxu0
  %v1189 = vadd.f32 %v1092, %v1188
  %v1190 = vpop.f32.mrf.mxu0
  %1191 = vmatprep.mubr.bf16.mxu0 0
  %1192 = vmatmul.mubr.bf16.gmra.mxu0 %v421
  %v1193 = vpop.f32.mrf.mxu0
  %v1194 = vadd.f32 %v1097, %v1193
  %v1195 = vpop.f32.mrf.mxu0
  %v1196 = vpop.f32.mrf.mxu0
  %v1197 = vadd.f32 %v1100, %v1196
  %v1198 = vpop.f32.mrf.mxu0
  %1199 = vmatprep.mubr.bf16.mxu0 0
  %1200 = vmatmul.mubr.bf16.gmra.mxu0 %v428
  %v1201 = vpop.f32.mrf.mxu0
  %v1202 = vadd.f32 %v1105, %v1201
  %v1203 = vpop.f32.mrf.mxu0
  %v1204 = vpop.f32.mrf.mxu0
  %v1205 = vadd.f32 %v1108, %v1204
  %v1206 = vpop.f32.mrf.mxu0
  %1207 = vmatprep.mubr.bf16.mxu0 0
  %1208 = vmatmul.mubr.bf16.gmra.mxu0 %v435
  %v1209 = vpop.f32.mrf.mxu0
  %v1210 = vadd.f32 %v1113, %v1209
  %v1211 = vpop.f32.mrf.mxu0
  %v1212 = vpop.f32.mrf.mxu0
  %v1213 = vadd.f32 %v1116, %v1212
  %v1214 = vpop.f32.mrf.mxu0
  %1215 = vdwg.mxu0
  %v1216 = vmax.f32 %v1154, 0.0
  %v1217 = vmax.f32 %v1157, 0.0
  %v1218 = vmax.f32 %v1162, 0.0
  %v1219 = vmax.f32 %v1165, 0.0
  %v1220 = vmax.f32 %v1170, 0.0
  %v1221 = vmax.f32 %v1173, 0.0
  %v1222 = vmax.f32 %v1178, 0.0
  %v1223 = vmax.f32 %v1181, 0.0
  %v1224 = vmax.f32 %v1186, 0.0
  %v1225 = vmax.f32 %v1189, 0.0
  %v1226 = vmax.f32 %v1194, 0.0
  %v1227 = vmax.f32 %v1197, 0.0
  %v1228 = vmax.f32 %v1202, 0.0
  %v1229 = vmax.f32 %v1205, 0.0
  %v1230 = vmax.f32 %v1210, 0.0
  %v1231 = vmax.f32 %v1213, 0.0
  %v1232 = vpack.c.bf16 %v1217, %v1216
  %v1233 = vpack.c.bf16 %v1219, %v1218
  %v1234 = vpack.c.bf16 %v1221, %v1220
  %v1235 = vpack.c.bf16 %v1223, %v1222
  %v1236 = vpack.c.bf16 %v1225, %v1224
  %v1237 = vpack.c.bf16 %v1227, %v1226
  %v1238 = vpack.c.bf16 %v1229, %v1228
  %v1239 = vpack.c.bf16 %v1231, %v1230
  %v1240 = vld [vmem:[%s3] sm:$0xf]
  %v1241 = vld [vmem:[%s3 + $0x4] sm:$0xf]
  %v1242 = vld [vmem:[%s3 + $0x8] sm:$0xf]
  %v1243 = vld [vmem:[%s3 + $0xc] sm:$0xf]
  %v1244 = vld [vmem:[%s3 + $0x10] sm:$0xf]
  %v1245 = vld [vmem:[%s3 + $0x14] sm:$0xf]
  %v1246 = vld [vmem:[%s3 + $0x18] sm:$0xf]
  %v1247 = vld [vmem:[%s3 + $0x1c] sm:$0xf]
  %v1248 = vld [vmem:[%s3 + $0x20] sm:$0xf]
  %v1249 = vld [vmem:[%s3 + $0x24] sm:$0xf]
  %v1250 = vld [vmem:[%s3 + $0x28] sm:$0xf]
  %v1251 = vld [vmem:[%s3 + $0x2c] sm:$0xf]
  %v1252 = vld [vmem:[%s3 + $0x30] sm:$0xf]
  %v1253 = vld [vmem:[%s3 + $0x34] sm:$0xf]
  %v1254 = vld [vmem:[%s3 + $0x38] sm:$0xf]
  %v1255 = vld [vmem:[%s3 + $0x3c] sm:$0xf]
  %v1256 = vld [vmem:[%s4] sm:$0x1]
  %v1258 = vlaneseq
  %v1259 = vshrl.u32 %v1258, 7
  %v1260 = vsub.s32 0, %v1259
  %v1261 = vrot.slane %v1256, %v1260
  %v1279 = vunpack.c.l.b16 %v1240
  %v1280 = vunpack.c.l.b16 %v1241
  %v1281 = vunpack.c.l.b16 %v1242
  %v1282 = vunpack.c.l.b16 %v1243
  %v1283 = vunpack.c.l.b16 %v1244
  %v1284 = vunpack.c.l.b16 %v1245
  %v1285 = vunpack.c.l.b16 %v1246
  %v1286 = vunpack.c.l.b16 %v1247
  %v1287 = vunpack.c.l.b16 %v1248
  %v1288 = vunpack.c.l.b16 %v1249
  %v1289 = vunpack.c.l.b16 %v1250
  %v1290 = vunpack.c.l.b16 %v1251
  %v1291 = vunpack.c.l.b16 %v1252
  %v1292 = vunpack.c.l.b16 %v1253
  %v1293 = vunpack.c.l.b16 %v1254
  %v1294 = vunpack.c.l.b16 %v1255
  %v1295 = vpack.c.b16 %v1280, %v1279
  %v1296 = vpack.c.b16 %v1282, %v1281
  %v1297 = vpack.c.b16 %v1284, %v1283
  %v1298 = vpack.c.b16 %v1286, %v1285
  %v1299 = vpack.c.b16 %v1288, %v1287
  %v1300 = vpack.c.b16 %v1290, %v1289
  %v1301 = vpack.c.b16 %v1292, %v1291
  %v1302 = vpack.c.b16 %v1294, %v1293
  %1311 = vmatprep.subr.bf16.mxu0 0
  %1312 = vmatpush1.bf16.msra.mxu0 %v1302
  %1313 = vmatprep.subr.bf16.mxu0 0
  %1314 = vmatpush1.bf16.msra.mxu0 %v1301
  %1315 = vmatprep.subr.bf16.mxu0 0
  %1316 = vmatpush1.bf16.msra.mxu0 %v1300
  %1317 = vmatprep.subr.bf16.mxu0 0
  %1318 = vmatpush1.bf16.msra.mxu0 %v1299
  %1319 = vmatprep.subr.bf16.mxu0 0
  %1320 = vmatpush1.bf16.msra.mxu0 %v1298
  %1321 = vmatprep.subr.bf16.mxu0 0
  %1322 = vmatpush1.bf16.msra.mxu0 %v1297
  %1323 = vmatprep.subr.bf16.mxu0 0
  %1324 = vmatpush1.bf16.msra.mxu0 %v1296
  %1325 = vmatprep.subr.bf16.mxu0 0
  %1326 = vmatpush1.bf16.msra.mxu0 %v1295
  %1327 = vmatprep.subr.bf16.mxu0 0
  %1328 = vmatpush2.bf16.msra.mxu0 0
  %1329 = vmatprep.subr.bf16.mxu0 0
  %1330 = vmatpush2.bf16.msra.mxu0 0
  %1331 = vmatprep.subr.bf16.mxu0 0
  %1332 = vmatpush2.bf16.msra.mxu0 0
  %1333 = vmatprep.subr.bf16.mxu0 0
  %1334 = vmatpush2.bf16.msra.mxu0 0
  %1335 = vmatprep.subr.bf16.mxu0 0
  %1336 = vmatpush2.bf16.msra.mxu0 0
  %1337 = vmatprep.subr.bf16.mxu0 0
  %1338 = vmatpush2.bf16.msra.mxu0 0
  %1339 = vmatprep.subr.bf16.mxu0 0
  %1340 = vmatpush2.bf16.msra.mxu0 0
  %1341 = vmatprep.subr.bf16.mxu0 0
  %1342 = vmatpush2.bf16.msra.mxu0 0
  %1343 = vmatprep.mubr.bf16.mxu0 0
  %1344 = vmatmul.mubr.bf16.gmra.mxu0 %v1232
  %v1345 = vpop.f32.mrf.mxu0
  %v1346 = vadd.f32 %v1261, %v1345
  %v1347 = vpop.f32.mrf.mxu0
  %v1348 = vpop.f32.mrf.mxu0
  %v1349 = vadd.f32 %v1261, %v1348
  %v1350 = vpop.f32.mrf.mxu0
  %1351 = vmatprep.mubr.bf16.mxu0 0
  %1352 = vmatmul.mubr.bf16.gmra.mxu0 %v1233
  %v1353 = vpop.f32.mrf.mxu0
  %v1354 = vadd.f32 %v1261, %v1353
  %v1355 = vpop.f32.mrf.mxu0
  %v1356 = vpop.f32.mrf.mxu0
  %v1357 = vadd.f32 %v1261, %v1356
  %v1358 = vpop.f32.mrf.mxu0
  %1359 = vmatprep.mubr.bf16.mxu0 0
  %1360 = vmatmul.mubr.bf16.gmra.mxu0 %v1234
  %v1361 = vpop.f32.mrf.mxu0
  %v1362 = vadd.f32 %v1261, %v1361
  %v1363 = vpop.f32.mrf.mxu0
  %v1364 = vpop.f32.mrf.mxu0
  %v1365 = vadd.f32 %v1261, %v1364
  %v1366 = vpop.f32.mrf.mxu0
  %1367 = vmatprep.mubr.bf16.mxu0 0
  %1368 = vmatmul.mubr.bf16.gmra.mxu0 %v1235
  %v1369 = vpop.f32.mrf.mxu0
  %v1370 = vadd.f32 %v1261, %v1369
  %v1371 = vpop.f32.mrf.mxu0
  %v1372 = vpop.f32.mrf.mxu0
  %v1373 = vadd.f32 %v1261, %v1372
  %v1374 = vpop.f32.mrf.mxu0
  %1375 = vmatprep.mubr.bf16.mxu0 0
  %1376 = vmatmul.mubr.bf16.gmra.mxu0 %v1236
  %v1377 = vpop.f32.mrf.mxu0
  %v1378 = vadd.f32 %v1261, %v1377
  %v1379 = vpop.f32.mrf.mxu0
  %v1380 = vpop.f32.mrf.mxu0
  %v1381 = vadd.f32 %v1261, %v1380
  %v1382 = vpop.f32.mrf.mxu0
  %1383 = vmatprep.mubr.bf16.mxu0 0
  %1384 = vmatmul.mubr.bf16.gmra.mxu0 %v1237
  %v1385 = vpop.f32.mrf.mxu0
  %v1386 = vadd.f32 %v1261, %v1385
  %v1387 = vpop.f32.mrf.mxu0
  %v1388 = vpop.f32.mrf.mxu0
  %v1389 = vadd.f32 %v1261, %v1388
  %v1390 = vpop.f32.mrf.mxu0
  %1391 = vmatprep.mubr.bf16.mxu0 0
  %1392 = vmatmul.mubr.bf16.gmra.mxu0 %v1238
  %v1393 = vpop.f32.mrf.mxu0
  %v1394 = vadd.f32 %v1261, %v1393
  %v1395 = vpop.f32.mrf.mxu0
  %v1396 = vpop.f32.mrf.mxu0
  %v1397 = vadd.f32 %v1261, %v1396
  %v1398 = vpop.f32.mrf.mxu0
  %1399 = vmatprep.mubr.bf16.mxu0 0
  %1400 = vmatmul.mubr.bf16.gmra.mxu0 %v1239
  %v1401 = vpop.f32.mrf.mxu0
  %v1402 = vadd.f32 %v1261, %v1401
  %v1403 = vpop.f32.mrf.mxu0
  %v1404 = vpop.f32.mrf.mxu0
  %v1405 = vadd.f32 %v1261, %v1404
  %v1406 = vpop.f32.mrf.mxu0
  %1407 = vdwg.mxu0
  %v1408 = vmax.f32 %v1346, 0.0
  %v1409 = vmax.f32 %v1349, 0.0
  %v1410 = vmax.f32 %v1354, 0.0
  %v1411 = vmax.f32 %v1357, 0.0
  %v1412 = vmax.f32 %v1362, 0.0
  %v1413 = vmax.f32 %v1365, 0.0
  %v1414 = vmax.f32 %v1370, 0.0
  %v1415 = vmax.f32 %v1373, 0.0
  %v1416 = vmax.f32 %v1378, 0.0
  %v1417 = vmax.f32 %v1381, 0.0
  %v1418 = vmax.f32 %v1386, 0.0
  %v1419 = vmax.f32 %v1389, 0.0
  %v1420 = vmax.f32 %v1394, 0.0
  %v1421 = vmax.f32 %v1397, 0.0
  %v1422 = vmax.f32 %v1402, 0.0
  %v1423 = vmax.f32 %v1405, 0.0
  %1424 = vst [vmem:[%s5] sm:$0xff] %v1408
  %1425 = vst [vmem:[%s5 + $0x8] sm:$0xff] %v1409
  %1426 = vst [vmem:[%s5 + $0x10] sm:$0xff] %v1410
  %1427 = vst [vmem:[%s5 + $0x18] sm:$0xff] %v1411
  %1428 = vst [vmem:[%s5 + $0x20] sm:$0xff] %v1412
  %1429 = vst [vmem:[%s5 + $0x28] sm:$0xff] %v1413
  %1430 = vst [vmem:[%s5 + $0x30] sm:$0xff] %v1414
  %1431 = vst [vmem:[%s5 + $0x38] sm:$0xff] %v1415
  %1432 = vst [vmem:[%s5 + $0x40] sm:$0xff] %v1416
  %1433 = vst [vmem:[%s5 + $0x48] sm:$0xff] %v1417
  %1434 = vst [vmem:[%s5 + $0x50] sm:$0xff] %v1418
  %1435 = vst [vmem:[%s5 + $0x58] sm:$0xff] %v1419
  %1436 = vst [vmem:[%s5 + $0x60] sm:$0xff] %v1420
  %1437 = vst [vmem:[%s5 + $0x68] sm:$0xff] %v1421
  %1438 = vst [vmem:[%s5 + $0x70] sm:$0xff] %v1422
  %1439 = vst [vmem:[%s5 + $0x78] sm:$0xff] %v1423
  // Predicated region
  $region22: #{mlp_forward.1} parent=0 // pred_check
    _
  $region23: #{mlp_forward.1} parent=0 // pred_check_branch
    %1441 = sbr.rel (0) target = $region25
  $region24: #{mlp_forward.1} parent=0 // pred_region
    _
  $region25: #{mlp_forward.1} parent=0 // pred_fallthru
    _
  // Predicated region
  $region26: #{mlp_forward.1} parent=0 // pred_check
    _
  $region27: #{mlp_forward.1} parent=0 // pred_check_branch
    %1443 = sbr.rel (0) target = $region29
  $region28: #{mlp_forward.1} parent=0 // pred_region
    _
  $region29: #{mlp_forward.1} parent=0 // pred_fallthru
    _

</llo_original>
